<compile_context>
chip_gen: v7x
topology: tpu7x:2x2x1
jax: 0.10.0
libtpu: 0.0.40
codegen_flags: <defaults>
</compile_context>

<pallas_src>
import jax
import jax.numpy as jnp
from jax.experimental import pallas as pl
from jax.experimental.pallas import tpu as pltpu


def _coral_kernel(x_ref, w_ref, b_ref, o_ref, acc_ref):
    # x_ref: (TN, TF), w_ref: (1, TF) lane-dense, b_ref: (1, K-1),
    # o_ref: (TN, K-1), acc_ref: (TN, 1) f32 scratch (resident across k).
    k = pl.program_id(1)

    @pl.when(k == 0)
    def _():
        acc_ref[...] = jnp.zeros_like(acc_ref)

    # Lane-dense weight row broadcast against the x tile: VPU multiply + XLU
    # lane reduction (hidden under the x-tile DMA).  f32 math on all gens.
    x32 = x_ref[...].astype(jnp.float32)
    w32 = w_ref[...].astype(jnp.float32)
    acc_ref[...] += jnp.sum(x32 * w32, axis=-1, keepdims=True)  # (TN, 1)

    @pl.when(k == pl.num_programs(1) - 1)
    def _():
        # (TN, 1) + (1, K-1) -> (TN, K-1) broadcast add on the VPU.
        o_ref[...] = (acc_ref[...] + b_ref[...]).astype(o_ref.dtype)


def _round_up(a, b):
    return ((a + b - 1) // b) * b


def coral_forward(x, weight, bias, *, block_bytes=4 << 20, tn_cap=2048,
                  tf_chunk=2048):
    """CORAL layer forward.

    x:      (N, F) float32 or bfloat16 (accepted as-is; no wrapper cast)
    weight: (1, F)  -- PyTorch Linear(size_in, 1, bias=False).weight layout
    bias:   (K-1,)
    returns (N, K-1) logits in x.dtype
    """
    n, f = x.shape
    assert weight.shape == (1, f), weight.shape
    km1 = bias.shape[0]
    itemsize = jnp.dtype(x.dtype).itemsize
    out_dtype = x.dtype
    bias2d = bias.reshape(1, km1).astype(jnp.float32)

    # ---- Feature-axis tiling ------------------------------------------------
    # Keep the whole feature axis in one block whenever an >=8-row x block
    # still fits the per-buffer budget: no reduction loop, no pad, no masking.
    # Otherwise fall back to tf_chunk-wide reduction chunks with zero-padded
    # tails (only triggers at very wide F, where the relative pad cost is tiny).
    if 8 * f * itemsize <= block_bytes:
        tf, f_pad = f, f
    else:
        tf, f_pad = tf_chunk, _round_up(f, tf_chunk)
    # TODO(synk): in-kernel tail-column masking could remove even this rare
    # wide-F zero-pad of x, at the cost of block-sized select temporaries.

    # ---- Batch-axis tiling ----------------------------------------------------
    tn = max(8, min(tn_cap, (block_bytes // (tf * itemsize)) // 8 * 8))
    tn = min(tn, _round_up(n, 8))
    # v7x has 2 TensorCores per chip: make sure the "parallel" batch axis has
    # at least two tiles so both cores issue DMAs (harmless on v5e/v6e).
    if n > 8 and pl.cdiv(n, tn) < 2:
        tn = _round_up(pl.cdiv(n, 2), 8)

    grid = (pl.cdiv(n, tn), f_pad // tf)

    # ---- Rare wide-F fallback padding (never along N). -------------------------
    x_p, w_p = x, weight
    if f_pad != f:
        x_p = jnp.pad(x, ((0, 0), (0, f_pad - f)))
        w_p = jnp.pad(weight, ((0, 0), (0, f_pad - f)))

    # ---- Explicit VMEM budget ---------------------------------------------------
    lane, sub = 128, 8
    w_item = jnp.dtype(w_p.dtype).itemsize
    tf_lanes = _round_up(tf, lane)
    x_buf = tn * tf_lanes * itemsize
    w_buf = sub * tf_lanes * w_item
    b_buf = sub * max(km1, lane) * 4
    o_buf = tn * max(km1, lane) * jnp.dtype(out_dtype).itemsize
    acc_buf = tn * lane * 4
    temps = 3 * tn * tf_lanes * 4          # f32 elementwise/reduce temporaries
    vmem_bytes = 2 * (x_buf + w_buf + b_buf + o_buf) + acc_buf + temps
    vmem_limit = min(max(int(vmem_bytes * 1.25) + (4 << 20), 8 << 20), 48 << 20)

    cost = pl.CostEstimate(
        flops=2 * n * f + n * km1,
        transcendentals=0,
        bytes_accessed=n * f * itemsize + f * w_item + 4 * km1
        + n * km1 * jnp.dtype(out_dtype).itemsize,
    )

    return pl.pallas_call(
        _coral_kernel,
        out_shape=jax.ShapeDtypeStruct((n, km1), out_dtype),
        grid_spec=pltpu.PrefetchScalarGridSpec(
            num_scalar_prefetch=0,
            grid=grid,
            in_specs=[
                pl.BlockSpec((tn, tf), lambda i, k: (i, k)),    # x tile
                pl.BlockSpec((1, tf), lambda i, k: (0, k)),     # weight row chunk
                pl.BlockSpec((1, km1), lambda i, k: (0, 0)),    # bias (resident)
            ],
            out_specs=pl.BlockSpec((tn, km1), lambda i, k: (i, 0)),
            scratch_shapes=[pltpu.VMEM((tn, 1), jnp.float32)],
        ),
        compiler_params=pltpu.CompilerParams(
            dimension_semantics=("parallel", "arbitrary"),
            vmem_limit_bytes=vmem_limit,
        ),
        cost_estimate=cost,
    )(x_p, w_p, bias2d)


class CoralLayerParams:
    """Deterministic parameter construction mirroring CoralLayer.__init__."""

    def __init__(self, size_in, num_classes, preinit_bias=True, key=None):
        if key is None:
            key = jax.random.PRNGKey(42)
        # torch.nn.Linear(size_in, 1, bias=False): weight shape (1, size_in),
        # init U(-1/sqrt(size_in), 1/sqrt(size_in)).  Kept lane-dense (1, F).
        bound = 1.0 / (size_in ** 0.5)
        self.weight = jax.random.uniform(
            key, (1, size_in), dtype=jnp.float32, minval=-bound, maxval=bound)
        if preinit_bias:
            self.bias = (jnp.arange(num_classes - 1, 0, -1, dtype=jnp.float32)
                         / (num_classes - 1))
        else:
            self.bias = jnp.zeros((num_classes - 1,), dtype=jnp.float32)

    def __call__(self, x, **kwargs):
        return coral_forward(x, self.weight, self.bias, **kwargs)


def _ref(x, weight, bias):
    return (jnp.dot(x.astype(jnp.float32), weight.astype(jnp.float32).T,
                    precision=jax.lax.Precision.HIGHEST)
            + bias.astype(jnp.float32)[None, :])


if __name__ == "__main__":
    key = jax.random.PRNGKey(0)
    k1, k2, k3, k4, k5, kw = jax.random.split(key, 6)

    # 1) Primary small test, shapes consistent with the module:
    #    x = (num_examples=8, num_features=32), num_classes=5.
    x1 = jax.random.normal(k1, (8, 32), dtype=jnp.float32)
    layer1 = CoralLayerParams(32, 5, preinit_bias=True, key=kw)
    out1 = jax.block_until_ready(layer1(x1))
    ref1 = _ref(x1, layer1.weight, layer1.bias)
    assert out1.shape == (8, 4), out1.shape
    assert jnp.allclose(out1, ref1, atol=1e-5, rtol=1e-5), "mismatch (small)"

    # 2) Ragged N (not a multiple of the batch tile): exercises the masked
    #    trailing output block -- no wrapper padding of x.
    x2 = jax.random.normal(k2, (100, 96), dtype=jnp.float32)
    layer2 = CoralLayerParams(96, 7, preinit_bias=True, key=kw)
    out2 = jax.block_until_ready(layer2(x2))
    ref2 = _ref(x2, layer2.weight, layer2.bias)
    assert out2.shape == (100, 6), out2.shape
    assert jnp.allclose(out2, ref2, atol=1e-5, rtol=1e-5), "mismatch (ragged N)"

    # 3) Forced feature chunking via a tiny block budget: exercises the k-axis
    #    reduction loop and the f32 VMEM accumulator.
    x3 = jax.random.normal(k3, (24, 4096), dtype=jnp.float32)
    layer3 = CoralLayerParams(4096, 5, preinit_bias=True, key=kw)
    out3 = jax.block_until_ready(layer3(x3, block_bytes=64 << 10))
    ref3 = _ref(x3, layer3.weight, layer3.bias)
    assert out3.shape == (24, 4), out3.shape
    assert jnp.allclose(out3, ref3, atol=1e-4, rtol=1e-5), "mismatch (chunked F)"

    # 4) Forced chunking with ragged F: exercises the rare zero-padded tail path.
    x4 = jax.random.normal(k4, (16, 3000), dtype=jnp.float32)
    layer4 = CoralLayerParams(3000, 6, preinit_bias=True, key=kw)
    out4 = jax.block_until_ready(layer4(x4, block_bytes=32 << 10))
    ref4 = _ref(x4, layer4.weight, layer4.bias)
    assert out4.shape == (16, 5), out4.shape
    assert jnp.allclose(out4, ref4, atol=1e-4, rtol=1e-5), "mismatch (ragged F)"

    # 5) bf16 activations accepted as-is (f32 accumulation in-kernel).
    x5 = jax.random.normal(k5, (16, 64), dtype=jnp.float32).astype(jnp.bfloat16)
    layer5 = CoralLayerParams(64, 5, preinit_bias=True, key=kw)
    out5 = jax.block_until_ready(layer5(x5))
    ref5 = _ref(x5, layer5.weight, layer5.bias)
    assert out5.shape == (16, 4) and out5.dtype == jnp.bfloat16
    assert jnp.allclose(out5.astype(jnp.float32), ref5, atol=3e-2, rtol=3e-2), \
        "mismatch (bf16)"

    print("KERNEL_OK")
</pallas_src>

<mosaic_0001>
module attributes {stable_mosaic.version = 11 : i64} {
  func.func @_coral_kernel(%arg0: i32, %arg1: i32, %arg2: memref<8x32xf32, #tpu.memory_space<vmem>>, %arg3: memref<1x32xf32, #tpu.memory_space<vmem>>, %arg4: memref<1x4xf32, #tpu.memory_space<vmem>>, %arg5: memref<8x4xf32, #tpu.memory_space<vmem>>, %arg6: memref<8x1xf32, #tpu.memory_space<vmem>>) attributes {dimension_semantics = [#tpu.dimension_semantics<parallel>, #tpu.dimension_semantics<arbitrary>], iteration_bounds = array<i64: 1, 1>, scalar_prefetch = 0 : i64, scratch_operands = 1 : i64, tpu.core_type = #tpu.core_type<tc>, window_params = [{transform_indices = @transform_0, window_bounds = array<i64: 8, 32>}, {transform_indices = @transform_1, window_bounds = array<i64: 1, 32>}, {pipeline_mode = #tpu.pipeline_mode<synchronous>, transform_indices = @transform_2, window_bounds = array<i64: 1, 4>}, {transform_indices = @transform_3, window_bounds = array<i64: 8, 4>}]} {
    %c0_i32 = arith.constant 0 : i32
    %0 = arith.cmpi eq, %arg1, %c0_i32 : i32
    %1 = arith.extui %0 : i1 to i32
    %c0_i32_0 = arith.constant 0 : i32
    %2 = arith.cmpi ne, %1, %c0_i32_0 : i32
    scf.if %2 {
      %cst_10 = arith.constant 0.000000e+00 : f32
      %15 = vector.broadcast %cst_10 : f32 to vector<8x1xf32>
      %c0_11 = arith.constant 0 : index
      %c0_12 = arith.constant 0 : index
      %16 = vector.load %arg6[%c0_11, %c0_12] : memref<8x1xf32, #tpu.memory_space<vmem>>, vector<8x1xf32>
      tpu.vector_store %arg6[%c0_11, %c0_12], %15 {strides = array<i32>} : memref<8x1xf32, #tpu.memory_space<vmem>>, vector<8x1xf32>,
    } else {
    }
    %c0 = arith.constant 0 : index
    %c0_1 = arith.constant 0 : index
    %3 = vector.load %arg2[%c0, %c0_1] : memref<8x32xf32, #tpu.memory_space<vmem>>, vector<8x32xf32>
    %c0_2 = arith.constant 0 : index
    %c0_3 = arith.constant 0 : index
    %4 = vector.load %arg3[%c0_2, %c0_3] : memref<1x32xf32, #tpu.memory_space<vmem>>, vector<1x32xf32>
    %c0_4 = arith.constant 0 : index
    %c0_5 = arith.constant 0 : index
    %5 = vector.load %arg6[%c0_4, %c0_5] : memref<8x1xf32, #tpu.memory_space<vmem>>, vector<8x1xf32>
    %6 = vector.broadcast %4 : vector<1x32xf32> to vector<8x32xf32>
    %7 = arith.mulf %3, %6 : vector<8x32xf32>
    %cst = arith.constant dense<0.000000e+00> : vector<8xf32>
    %8 = vector.multi_reduction <add>, %7, %cst [1] : vector<8x32xf32> to vector<8xf32>
    %9 = vector.shape_cast %8 : vector<8xf32> to vector<8x1xf32>
    %10 = arith.addf %5, %9 : vector<8x1xf32>
    %c0_6 = arith.constant 0 : index
    %c0_7 = arith.constant 0 : index
    %11 = vector.load %arg6[%c0_6, %c0_7] : memref<8x1xf32, #tpu.memory_space<vmem>>, vector<8x1xf32>
    tpu.vector_store %arg6[%c0_6, %c0_7], %10 {strides = array<i32>} : memref<8x1xf32, #tpu.memory_space<vmem>>, vector<8x1xf32>,
    %c0_i32_8 = arith.constant 0 : i32
    %12 = arith.cmpi eq, %arg1, %c0_i32_8 : i32
    %13 = arith.extui %12 : i1 to i32
    %c0_i32_9 = arith.constant 0 : i32
    %14 = arith.cmpi ne, %13, %c0_i32_9 : i32
    scf.if %14 {
      %c0_10 = arith.constant 0 : index
      %c0_11 = arith.constant 0 : index
      %15 = vector.load %arg6[%c0_10, %c0_11] : memref<8x1xf32, #tpu.memory_space<vmem>>, vector<8x1xf32>
      %c0_12 = arith.constant 0 : index
      %c0_13 = arith.constant 0 : index
      %16 = vector.load %arg4[%c0_12, %c0_13] : memref<1x4xf32, #tpu.memory_space<vmem>>, vector<1x4xf32>
      %17 = vector.broadcast %15 : vector<8x1xf32> to vector<8x4xf32>
      %18 = vector.broadcast %16 : vector<1x4xf32> to vector<8x4xf32>
      %19 = arith.addf %17, %18 : vector<8x4xf32>
      %c0_14 = arith.constant 0 : index
      %c0_15 = arith.constant 0 : index
      %20 = vector.load %arg5[%c0_14, %c0_15] : memref<8x4xf32, #tpu.memory_space<vmem>>, vector<8x4xf32>
      tpu.vector_store %arg5[%c0_14, %c0_15], %19 {strides = array<i32>} : memref<8x4xf32, #tpu.memory_space<vmem>>, vector<8x4xf32>,
    } else {
    }
    return
  }
  func.func @transform_0(%arg0: i32, %arg1: i32) -> (i32, i32) {
    %c0_i32 = arith.constant 0 : i32
    return %arg0, %arg1 : i32, i32
  }
  func.func @transform_1(%arg0: i32, %arg1: i32) -> (i32, i32) {
    %c0_i32 = arith.constant 0 : i32
    %c0_i32_0 = arith.constant 0 : i32
    return %c0_i32, %arg1 : i32, i32
  }
  func.func @transform_2(%arg0: i32, %arg1: i32) -> (i32, i32) {
    %c0_i32 = arith.constant 0 : i32
    %c0_i32_0 = arith.constant 0 : i32
    %c0_i32_1 = arith.constant 0 : i32
    return %c0_i32, %c0_i32_0 : i32, i32
  }
  func.func @transform_3(%arg0: i32, %arg1: i32) -> (i32, i32) {
    %c0_i32 = arith.constant 0 : i32
    %c0_i32_0 = arith.constant 0 : i32
    return %arg0, %c0_i32 : i32, i32
  }
}

</mosaic_0001>

<llo_original>
// kernel: tpu_custom_call.1
$region0: #{tpu_custom_call.1}
  #allocation0 [shape = 'u32[]', space=smem, size = 0x4, offset = 0x4, fixed_abs, tag = 'smem constant byte address 0x4 - core index']
  #allocation1 [shape = 'u32[144,128]{1,0:T(1,128)}', space=vmem, size = 0x12000, scoped, tag = 'internal scratch']
  #allocation2 [shape = 'f32[8,1]{1,0:T(8,128)}', space=vmem, size = 0x1000, scoped, tag = 'scratch operand']
  %s0 = inlined_call_operand.hbm [shape: f32[8,32], index: 0, kind: input, shape index: {}]
  %s1 = inlined_call_operand.vmem [shape: f32[1,32], index: 1, kind: input, shape index: {}]
  %s2 = inlined_call_operand.vmem [shape: f32[1,4], index: 2, kind: input, shape index: {}]
  %s3 = inlined_call_operand.vmem [shape: f32[8,4], index: 3, kind: output, shape index: {}]
  %s4 = sld [smem:[#allocation0]]
  $region34: #{tpu_custom_call.1} parent=0
    _
  %s6 = ssub.s32 1, %s4
  %s7 = scalar_select 0, %s6, %s4
  $region1: #{tpu_custom_call.1} parent=0
    #allocation3 [shape = 'u8[4096]{0}', space=vmem, size = 0x1000, scoped, tag = 'input window, operand 0, single buffered']
    #allocation4 [shape = 's32[1]{0}', space=sflag, size = 0x4, scoped, tag = 'scoped memory for tpu_custom_call.1']
    %8 = vsyncpa [#allocation4], 0
    // Predicated region
    $region2: #{tpu_custom_call.1} parent=1 // pred_check
      _
    $region3: #{tpu_custom_call.1} parent=1 // pred_check_branch
      %10 = sbr.rel (0) target = $region5
    $region4: #{tpu_custom_call.1} parent=1 // pred_region
      %s12 = ssub.s32 128, 128
      %13 = vsyncadd [#allocation4], %s12
      %s15 = sshll.u32 [#allocation3], 4
      %s16 = int_to_ptr.vmem [resolvable:$true] %s15
      %18 = dma.hbm_to_vmem [thread:$0]  %s0, 128, %s16, [#allocation4]
    $region5: #{tpu_custom_call.1} parent=1 // pred_fallthru
      _
    // Predicated region
    $region6: #{tpu_custom_call.1} parent=1 // pred_check
      _
    $region7: #{tpu_custom_call.1} parent=1 // pred_check_branch
      %20 = sbr.rel (0) target = $region9
    $region8: #{tpu_custom_call.1} parent=1 // pred_region
      _
    $region9: #{tpu_custom_call.1} parent=1 // pred_fallthru
      _
    // Predicated region
    $region10: #{tpu_custom_call.1} parent=1 // pred_check
      _
    $region11: #{tpu_custom_call.1} parent=1 // pred_check_branch
      %22 = sbr.rel (0) target = $region13
    $region12: #{tpu_custom_call.1} parent=1 // pred_region
      _
    $region13: #{tpu_custom_call.1} parent=1 // pred_fallthru
      _
    // Predicated region
    $region14: #{tpu_custom_call.1} parent=1 // pred_check
      _
    $region15: #{tpu_custom_call.1} parent=1 // pred_check_branch
      %24 = sbr.rel (0) target = $region17
    $region16: #{tpu_custom_call.1} parent=1 // pred_region
      %25 = dma.done [#allocation4], 128
    $region17: #{tpu_custom_call.1} parent=1 // pred_fallthru
      _
    %p26 = scmp.eq.s32.totalorder 0, 0
    // Predicated region
    $region18: #{tpu_custom_call.1} parent=1 // pred_check
      %p27 = pneg %p26
    $region19: #{tpu_custom_call.1} parent=1 // pred_check_branch
      %29 = sbr.rel (%p27) target = $region21
    $region20: #{tpu_custom_call.1} parent=1 // pred_region
      %vm30 = vcmask 7168
      %31 = vst.msk [vmem:[#allocation2] sm:$0xff] %vm30, 0.0
    $region21: #{tpu_custom_call.1} parent=1 // pred_fallthru
      _
    %v32 = vld [vmem:[#allocation3] sm:$0xff]
    %v33 = vld [vmem:[%s1] sm:$0x1]
    %v34 = vld [vmem:[#allocation2] sm:$0xff]
    %v36 = vlaneseq
    %v37 = vshrl.u32 %v36, 7
    %v38 = vsub.s32 0, %v37
    %v39 = vrot.slane %v33, %v38
    %v41 = vmul.f32 %v32, %v39
    %vm42 = vcmask 261120
    %v43 = vsel %vm42, %v41, 0.0
    %44 = vadd.xlane.f32.xlu0 %v43
    %v45 = vpop.xlane.xlu0 %44
    %v46 = vadd.f32 %v34, %v45
    %vm47 = vcmask 7168
    %48 = vst.msk [vmem:[#allocation2] sm:$0xff] %vm47, %v46
    // Predicated region
    $region22: #{tpu_custom_call.1} parent=1 // pred_check
      %p49 = pneg %p26
    $region23: #{tpu_custom_call.1} parent=1 // pred_check_branch
      %51 = sbr.rel (%p49) target = $region25
    $region24: #{tpu_custom_call.1} parent=1 // pred_region
      %v52 = vld [vmem:[#allocation2] sm:$0xff]
      %v53 = vld [vmem:[%s2] sm:$0x1]
      %55 = vset.pattern.permute.xlu0 0
      %56 = vperm.xlu0 %55, %v52
      %v57 = vpop.permute.xlu0 %56
      %v60 = vlaneseq
      %v61 = vshrl.u32 %v60, 7
      %v62 = vsub.s32 0, %v61
      %v63 = vrot.slane %v53, %v62
      %v65 = vadd.f32 %v57, %v63
      %vm66 = vcmask 31744
      %67 = vst.msk [vmem:[%s3] sm:$0xff] %vm66, %v65
    $region25: #{tpu_custom_call.1} parent=1 // pred_fallthru
      _
    // Predicated region
    $region26: #{tpu_custom_call.1} parent=1 // pred_check
      _
    $region27: #{tpu_custom_call.1} parent=1 // pred_check_branch
      %69 = sbr.rel (0) target = $region29
    $region28: #{tpu_custom_call.1} parent=1 // pred_region
      _
    $region29: #{tpu_custom_call.1} parent=1 // pred_fallthru
      _
    // Predicated region
    $region30: #{tpu_custom_call.1} parent=1 // pred_check
      _
    $region31: #{tpu_custom_call.1} parent=1 // pred_check_branch
      %71 = sbr.rel (0) target = $region33
    $region32: #{tpu_custom_call.1} parent=1 // pred_region
      _
    $region33: #{tpu_custom_call.1} parent=1 // pred_fallthru
      _
    %72 = vsyncpa [#allocation4], 1

</llo_original>
